<compile_context>
chip_gen: v5e
topology: v5e:2x2
jax: 0.10.0
libtpu: 0.0.40
codegen_flags: <defaults>
</compile_context>

<pallas_src>
import functools
import math

import jax
import jax.numpy as jnp
from jax.experimental import pallas as pl
from jax.experimental.pallas import tpu as pltpu


def _round_up(n, m):
    return ((n + m - 1) // m) * m


def _pick_tile_l(L, d_model, out_block_budget_bytes=8 << 20):
    """Rows per output tile.

    Bounded so the double-buffered f32 output block (2 * tile_l * lanes(d) * 4B)
    stays within `out_block_budget_bytes`; multiple of 8; capped at 2048 rows;
    the full L (single tile, block == full dim -> always layout-legal) if it
    already fits.
    """
    d_lanes = _round_up(max(d_model, 1), 128)
    cap = out_block_budget_bytes // (2 * 4 * d_lanes)
    cap = max(8, min(int(cap), 2048))
    if L <= cap:
        return L
    return max(8, (cap // 8) * 8)


def _token_embedding_kernel(x_ref, w_ref, o_ref, *, tile_l, seq_len):
    # x_ref: (1, L_pad, c_in)   w_ref: (3, c_in, d_model)   o_ref: (1, tile_l, d_model)
    l = pl.program_id(1)
    start = pl.multiple_of(l * tile_l, tile_l)

    xv = x_ref.at[0]                                  # (L_pad, c_in) view, no load
    c = xv[pl.ds(start, tile_l), :]                   # current tile rows

    # Circular halo rows; wrap uses the true (unpadded) sequence length.
    prev_idx = jnp.where(start > 0, start - 1, seq_len - 1)
    nxt_pos = start + tile_l
    next_idx = jnp.where(nxt_pos >= seq_len, nxt_pos - seq_len, nxt_pos)
    prev_row = xv[pl.ds(prev_idx, 1), :]              # (1, c_in)
    next_row = xv[pl.ds(next_idx, 1), :]              # (1, c_in)

    if tile_l > 1:
        p = jnp.concatenate([prev_row, c[:-1, :]], axis=0)   # x[(t-1) % L]
        n = jnp.concatenate([c[1:, :], next_row], axis=0)    # x[(t+1) % L]
    else:
        p, n = prev_row, next_row

    # Three small-K dots into an f32 accumulator (f32 operands: module parity).
    acc = jnp.dot(p, w_ref[0], preferred_element_type=jnp.float32)
    acc += jnp.dot(c, w_ref[1], preferred_element_type=jnp.float32)
    acc += jnp.dot(n, w_ref[2], preferred_element_type=jnp.float32)
    o_ref[0] = acc.astype(o_ref.dtype)


def token_embedding(x, weight, *, out_block_budget_bytes=8 << 20):
    """x: (B, L, c_in) float; weight: (d_model, c_in, 3) (PyTorch Conv1d layout)."""
    B, L, c_in = x.shape
    d_model = weight.shape[0]

    tile_l = _pick_tile_l(L, d_model, out_block_budget_bytes)
    nl = pl.cdiv(L, tile_l)
    L_pad = nl * tile_l
    if L_pad != L:
        # Wrap-pad along time so intra-tile "next" rows at the seam (row L-1)
        # stay circularly correct; the padded output rows are write-masked.
        x = jnp.pad(x, ((0, 0), (0, L_pad - L), (0, 0)), mode="wrap")

    # (3, c_in, d_model): w3[k] = W[:, :, k]^T  ->  out = p@w3[0] + c@w3[1] + n@w3[2]
    w3 = jnp.transpose(weight, (2, 1, 0)).astype(x.dtype)

    kernel = functools.partial(_token_embedding_kernel, tile_l=tile_l, seq_len=L)

    # Rough VMEM need (double-buffered, lane/sublane-padded) + headroom.
    lanes = lambda n: _round_up(max(n, 1), 128)
    subl = lambda n: _round_up(max(n, 1), 8)
    est = 4 * (2 * subl(L_pad) * lanes(c_in)
               + 2 * 3 * subl(c_in) * lanes(d_model)
               + 2 * subl(tile_l) * lanes(d_model))
    vmem_limit = int(min(64 << 20, max(2 * est, 16 << 20)))

    itemsize = jnp.dtype(x.dtype).itemsize
    cost = pl.CostEstimate(
        flops=2 * B * L * (3 * c_in) * d_model,
        transcendentals=0,
        bytes_accessed=int(B * L_pad * c_in * itemsize
                           + w3.size * itemsize
                           + B * L * d_model * itemsize),
    )

    return pl.pallas_call(
        kernel,
        out_shape=jax.ShapeDtypeStruct((B, L, d_model), x.dtype),
        grid=(B, nl),
        in_specs=[
            # Full (padded) time axis per batch; block index constant across the
            # l axis -> fetched once per batch, stays resident in VMEM.
            pl.BlockSpec((1, L_pad, c_in), lambda b, l: (b, 0, 0)),
            # Weights resident for the whole kernel.
            pl.BlockSpec((3, c_in, d_model), lambda b, l: (0, 0, 0)),
        ],
        out_specs=pl.BlockSpec((1, tile_l, d_model), lambda b, l: (b, l, 0)),
        compiler_params=pltpu.CompilerParams(
            dimension_semantics=("parallel", "parallel"),
            vmem_limit_bytes=vmem_limit,
        ),
        cost_estimate=cost,
    )(x, w3)


def kaiming_normal_conv1d(key, d_model, c_in, ksize=3):
    # nn.init.kaiming_normal_(mode='fan_in', nonlinearity='leaky_relu'):
    # negative_slope=0.01 -> gain = sqrt(2/(1+0.01^2)), fan_in = c_in*ksize.
    fan_in = c_in * ksize
    gain = math.sqrt(2.0 / (1.0 + 0.01 ** 2))
    std = gain / math.sqrt(fan_in)
    return std * jax.random.normal(key, (d_model, c_in, ksize), dtype=jnp.float32)


def reference(x, weight):
    # Pure-JAX reference of the circular conv (f32).
    x_prev = jnp.roll(x, 1, axis=1)
    x_next = jnp.roll(x, -1, axis=1)
    return (
        jnp.einsum("blc,dc->bld", x_prev, weight[:, :, 0])
        + jnp.einsum("blc,dc->bld", x, weight[:, :, 1])
        + jnp.einsum("blc,dc->bld", x_next, weight[:, :, 2])
    )


if __name__ == "__main__":
    key = jax.random.PRNGKey(0)
    kx, kw, kx2 = jax.random.split(key, 3)

    # Case 1: small shapes matching the module's forward (B, L, c_in) -> (B, L, d_model).
    B, L, c_in, d_model = 2, 8, 4, 32
    x = jax.random.normal(kx, (B, L, c_in), dtype=jnp.float32)
    w = kaiming_normal_conv1d(kw, d_model, c_in)

    out = jax.block_until_ready(token_embedding(x, w))
    ref = reference(x, w)
    assert out.shape == (B, L, d_model)
    assert out.dtype == x.dtype
    assert jnp.allclose(out, ref, atol=1e-2, rtol=1e-2), float(jnp.max(jnp.abs(out - ref)))

    # Case 2: exercise the tiled path (L not a multiple of tile_l -> cdiv grid,
    # wrap padding, masked partial last tile) with a tiny output-block budget.
    L2 = 20
    x2 = jax.random.normal(kx2, (B, L2, c_in), dtype=jnp.float32)
    out2 = jax.block_until_ready(token_embedding(x2, w, out_block_budget_bytes=8 * 1024))
    ref2 = reference(x2, w)
    assert out2.shape == (B, L2, d_model)
    assert jnp.allclose(out2, ref2, atol=1e-2, rtol=1e-2), float(jnp.max(jnp.abs(out2 - ref2)))

    print("KERNEL_OK")
</pallas_src>

<mosaic_0001>
module attributes {stable_mosaic.version = 11 : i64} {
  func.func @_token_embedding_kernel(%arg0: i32, %arg1: i32, %arg2: memref<1x8x4xf32, #tpu.memory_space<vmem>>, %arg3: memref<3x4x32xf32, #tpu.memory_space<vmem>>, %arg4: memref<1x8x32xf32, #tpu.memory_space<vmem>>) attributes {dimension_semantics = [#tpu.dimension_semantics<parallel>, #tpu.dimension_semantics<parallel>], iteration_bounds = array<i64: 2, 1>, scalar_prefetch = 0 : i64, scratch_operands = 0 : i64, tpu.core_type = #tpu.core_type<tc>, window_params = [{transform_indices = @transform_0, window_bounds = array<i64: 1, 8, 4>}, {pipeline_mode = #tpu.pipeline_mode<synchronous>, transform_indices = @transform_1, window_bounds = array<i64: 3, 4, 32>}, {transform_indices = @transform_2, window_bounds = array<i64: 1, 8, 32>}]} {
    %c8_i32 = arith.constant 8 : i32
    %0 = arith.muli %arg1, %c8_i32 : i32
    %1 = tpu.assume_multiple %0, 8 : i32
    %c0_i32 = arith.constant 0 : i32
    %c0_i32_0 = arith.constant 0 : i32
    %c0_i32_1 = arith.constant 0 : i32
    %2 = tpu.memref_slice %arg2[%c0_i32, %c0_i32_0, %c0_i32_1] : memref<1x8x4xf32, #tpu.memory_space<vmem>> -> memref<1x8x4xf32, #tpu.memory_space<vmem>>
    %3 = tpu.memref_squeeze %2 : memref<1x8x4xf32, #tpu.memory_space<vmem>> -> memref<8x4xf32, #tpu.memory_space<vmem>>
    %4 = arith.index_cast %1 : i32 to index
    %c0 = arith.constant 0 : index
    %5 = vector.load %3[%4, %c0] : memref<8x4xf32, #tpu.memory_space<vmem>>, vector<8x4xf32>
    %c0_i32_2 = arith.constant 0 : i32
    %6 = arith.cmpi sgt, %1, %c0_i32_2 : i32
    %c1_i32 = arith.constant 1 : i32
    %7 = arith.subi %1, %c1_i32 : i32
    %c7_i32 = arith.constant 7 : i32
    %8 = arith.select %6, %7, %c7_i32 : i32
    %c8_i32_3 = arith.constant 8 : i32
    %9 = arith.addi %1, %c8_i32_3 : i32
    %c8_i32_4 = arith.constant 8 : i32
    %10 = arith.cmpi sge, %9, %c8_i32_4 : i32
    %c8_i32_5 = arith.constant 8 : i32
    %11 = arith.subi %9, %c8_i32_5 : i32
    %12 = arith.select %10, %11, %9 : i32
    %c0_i32_6 = arith.constant 0 : i32
    %c0_i32_7 = arith.constant 0 : i32
    %c0_i32_8 = arith.constant 0 : i32
    %13 = tpu.memref_slice %arg2[%c0_i32_6, %c0_i32_7, %c0_i32_8] : memref<1x8x4xf32, #tpu.memory_space<vmem>> -> memref<1x8x4xf32, #tpu.memory_space<vmem>>
    %14 = tpu.memref_squeeze %13 : memref<1x8x4xf32, #tpu.memory_space<vmem>> -> memref<8x4xf32, #tpu.memory_space<vmem>>
    %15 = arith.index_cast %8 : i32 to index
    %c0_9 = arith.constant 0 : index
    %16 = vector.load %14[%15, %c0_9] : memref<8x4xf32, #tpu.memory_space<vmem>>, vector<1x4xf32>
    %c0_i32_10 = arith.constant 0 : i32
    %c0_i32_11 = arith.constant 0 : i32
    %c0_i32_12 = arith.constant 0 : i32
    %17 = tpu.memref_slice %arg2[%c0_i32_10, %c0_i32_11, %c0_i32_12] : memref<1x8x4xf32, #tpu.memory_space<vmem>> -> memref<1x8x4xf32, #tpu.memory_space<vmem>>
    %18 = tpu.memref_squeeze %17 : memref<1x8x4xf32, #tpu.memory_space<vmem>> -> memref<8x4xf32, #tpu.memory_space<vmem>>
    %19 = arith.index_cast %12 : i32 to index
    %c0_13 = arith.constant 0 : index
    %20 = vector.load %18[%19, %c0_13] : memref<8x4xf32, #tpu.memory_space<vmem>>, vector<1x4xf32>
    %21 = vector.extract_strided_slice %5 {offsets = [0, 0], sizes = [7, 4], strides = [1, 1]} : vector<8x4xf32> to vector<7x4xf32>
    %22 = tpu.concatenate %16, %21 in 0 : vector<1x4xf32>, vector<7x4xf32> -> vector<8x4xf32>
    %23 = vector.extract_strided_slice %5 {offsets = [1, 0], sizes = [7, 4], strides = [1, 1]} : vector<8x4xf32> to vector<7x4xf32>
    %24 = tpu.concatenate %23, %20 in 0 : vector<7x4xf32>, vector<1x4xf32> -> vector<8x4xf32>
    %c0_14 = arith.constant 0 : index
    %c0_15 = arith.constant 0 : index
    %c0_16 = arith.constant 0 : index
    %25 = vector.load %arg3[%c0_14, %c0_15, %c0_16] : memref<3x4x32xf32, #tpu.memory_space<vmem>>, vector<1x4x32xf32>
    %26 = vector.shape_cast %25 : vector<1x4x32xf32> to vector<4x32xf32>
    %cst = arith.constant dense<0.000000e+00> : vector<8x32xf32>
    %27 = tpu.matmul %22, %26, %cst {dimension_numbers = #tpu.dot_dimension_numbers<[1], [0], [0], [1], [0, 0, 1, 1], [], []>} : vector<8x4xf32>, vector<4x32xf32>, vector<8x32xf32> -> vector<8x32xf32>
    %c1 = arith.constant 1 : index
    %c0_17 = arith.constant 0 : index
    %c0_18 = arith.constant 0 : index
    %28 = vector.load %arg3[%c1, %c0_17, %c0_18] : memref<3x4x32xf32, #tpu.memory_space<vmem>>, vector<1x4x32xf32>
    %29 = vector.shape_cast %28 : vector<1x4x32xf32> to vector<4x32xf32>
    %cst_19 = arith.constant dense<0.000000e+00> : vector<8x32xf32>
    %30 = tpu.matmul %5, %29, %cst_19 {dimension_numbers = #tpu.dot_dimension_numbers<[1], [0], [0], [1], [0, 0, 1, 1], [], []>} : vector<8x4xf32>, vector<4x32xf32>, vector<8x32xf32> -> vector<8x32xf32>
    %31 = arith.addf %27, %30 : vector<8x32xf32>
    %c2 = arith.constant 2 : index
    %c0_20 = arith.constant 0 : index
    %c0_21 = arith.constant 0 : index
    %32 = vector.load %arg3[%c2, %c0_20, %c0_21] : memref<3x4x32xf32, #tpu.memory_space<vmem>>, vector<1x4x32xf32>
    %33 = vector.shape_cast %32 : vector<1x4x32xf32> to vector<4x32xf32>
    %cst_22 = arith.constant dense<0.000000e+00> : vector<8x32xf32>
    %34 = tpu.matmul %24, %33, %cst_22 {dimension_numbers = #tpu.dot_dimension_numbers<[1], [0], [0], [1], [0, 0, 1, 1], [], []>} : vector<8x4xf32>, vector<4x32xf32>, vector<8x32xf32> -> vector<8x32xf32>
    %35 = arith.addf %31, %34 : vector<8x32xf32>
    %c0_23 = arith.constant 0 : index
    %c0_24 = arith.constant 0 : index
    %c0_25 = arith.constant 0 : index
    %36 = vector.load %arg4[%c0_23, %c0_24, %c0_25] : memref<1x8x32xf32, #tpu.memory_space<vmem>>, vector<1x8x32xf32>
    %37 = vector.shape_cast %36 : vector<1x8x32xf32> to vector<8x32xf32>
    %38 = vector.shape_cast %35 : vector<8x32xf32> to vector<1x8x32xf32>
    tpu.vector_store %arg4[%c0_23, %c0_24, %c0_25], %38 {strides = array<i32>} : memref<1x8x32xf32, #tpu.memory_space<vmem>>, vector<1x8x32xf32>,
    return
  }
  func.func @transform_0(%arg0: i32, %arg1: i32) -> (i32, i32, i32) {
    %c0_i32 = arith.constant 0 : i32
    %c0_i32_0 = arith.constant 0 : i32
    %c0_i32_1 = arith.constant 0 : i32
    return %arg0, %c0_i32, %c0_i32_0 : i32, i32, i32
  }
  func.func @transform_1(%arg0: i32, %arg1: i32) -> (i32, i32, i32) {
    %c0_i32 = arith.constant 0 : i32
    %c0_i32_0 = arith.constant 0 : i32
    %c0_i32_1 = arith.constant 0 : i32
    %c0_i32_2 = arith.constant 0 : i32
    return %c0_i32, %c0_i32_0, %c0_i32_1 : i32, i32, i32
  }
  func.func @transform_2(%arg0: i32, %arg1: i32) -> (i32, i32, i32) {
    %c0_i32 = arith.constant 0 : i32
    %c0_i32_0 = arith.constant 0 : i32
    return %arg0, %arg1, %c0_i32 : i32, i32, i32
  }
}

</mosaic_0001>

<llo_original>
// kernel: tpu_custom_call.1
$region0: #{tpu_custom_call.1}
  #allocation0 [shape = 'u32[]', space=smem, size = 0x4, offset = 0x4, fixed_abs, tag = 'smem constant byte address 0x4 - core index']
  #allocation1 [shape = 'u32[72,128]{1,0:T(1,128)}', space=vmem, size = 0x9000, scoped, tag = 'internal scratch']
  %s0 = inlined_call_operand.vmem [shape: f32[2,8,4], index: 0, kind: input, shape index: {}]
  %s1 = inlined_call_operand.vmem [shape: f32[3,4,32], index: 1, kind: input, shape index: {}]
  %s2 = inlined_call_operand.hbm [shape: f32[2,8,32], index: 2, kind: output, shape index: {}]
  %s3 = sld [smem:[#allocation0]]
  $region41: #{tpu_custom_call.1} parent=0
    _
  %s5 = ssub.s32 1, %s3
  %s6 = scalar_select 0, %s5, %s3
  $region1: #{tpu_custom_call.1} parent=0
    #allocation2 [shape = 'u8[8192]{0}', space=vmem, size = 0x2000, scoped, tag = 'output window, operand 0']
    #allocation3 [shape = 's32[2]{0}', space=sflag, size = 0x8, scoped, tag = 'scoped memory for tpu_custom_call.1']
    %7 = vsyncpa [#allocation3], 0
    %s8 = scalar_lea.sflag [#allocation3], 1
    %9 = vsyncpa %s8, 0
    loop: start=0, step=1, limit=4
    $region2: #{tpu_custom_call.1} parent=1 // loop_pre_header
      _
    $region3: #{tpu_custom_call.1} parent=1 // loop_header
      %s11 = sphi 0, %s15
      %p12 = scmp.ge.s32.totalorder %s11, 4
      %s18 = sphi 0, %s30
      %s19 = sphi 0, %s26
      %s20 = sphi 0, %s18
      %s21 = sphi 0, %s19
      %s22 = sphi 0, %s20
      %s23 = sphi 0, %s21
      %s33 = sphi 0, %s35
      %s36 = sphi 0, %s33
      %s37 = sphi 0, %s36
      %s53 = sphi 0, %s37
      %s57 = sphi 0, %s57
      %s59 = sphi 0, %s57
      %s60 = sphi 0, %s59
      %s74 = sphi 0, %s60
      %s82 = sphi 0, %s84
      %s85 = sphi 0, %s82
      %s86 = sphi 0, %s85
      %s102 = sphi 0, %s86
    $region4: #{tpu_custom_call.1} parent=1 // loop_header_branch
      %14 = sbr.rel (%p12) target = $region8
    $region5: #{tpu_custom_call.1} parent=1 // loop_body
      %s16 = ssub.s32 %s11, 1
      %s17 = ssub.s32 %s11, 2
      %s24 = sadd.s32 1, %s19
      %p25 = scmp.ge.s32.totalorder %s24, 1
      %s26 = scalar_select %p25, 0, %s24
      %s27 = sadd.s32 1, %s18
      %s28 = scalar_select %p25, %s27, %s18
      %p29 = scmp.ge.s32.totalorder %s28, 2
      %s30 = scalar_select %p29, 0, %s28
      %s31 = ssub.s32 %s18, %s30
      %p32 = scmp.eq.s32.totalorder %s31, 0
      %s34 = sadd.s32 %s33, 1
      %s35 = scalar_select %p32, %s33, %s34
      %p38 = pneg %p32
      %p39 = scmp.eq.s32.totalorder %s11, 1
      %p40 = por %p38, %p39
      %p41 = scmp.ne.s32.totalorder %s33, %s36
      %p42 = scmp.eq.s32.totalorder %s11, 0
      %p43 = por %p41, %p42
      %p44 = scmp.ne.s32.totalorder %s33, %s36
      %p45 = scmp.eq.s32.totalorder %s16, 1
      %p46 = por %p44, %p45
      %p47 = scmp.ne.s32.totalorder %s36, %s37
      %p48 = scmp.eq.s32.totalorder %s16, 0
      %p49 = por %p47, %p48
      %p50 = scmp.ne.s32.totalorder %s36, %s37
      %p51 = scmp.eq.s32.totalorder %s17, 1
      %p52 = por %p50, %p51
      %p54 = scmp.ne.s32.totalorder %s37, %s53
      %p55 = scmp.eq.s32.totalorder %s17, 0
      %p56 = por %p54, %p55
      %s58 = sadd.s32 %s57, 1
      %p61 = scmp.eq.s32.totalorder %s11, 1
      %p62 = scmp.ne.s32.totalorder %s57, %s59
      %p63 = scmp.eq.s32.totalorder %s11, 0
      %p64 = por %p62, %p63
      %p65 = scmp.ne.s32.totalorder %s57, %s59
      %p66 = scmp.eq.s32.totalorder %s16, 1
      %p67 = por %p65, %p66
      %p68 = scmp.ne.s32.totalorder %s59, %s60
      %p69 = scmp.eq.s32.totalorder %s16, 0
      %p70 = por %p68, %p69
      %p71 = scmp.ne.s32.totalorder %s59, %s60
      %p72 = scmp.eq.s32.totalorder %s17, 1
      %p73 = por %p71, %p72
      %p75 = scmp.ne.s32.totalorder %s60, %s74
      %p76 = scmp.eq.s32.totalorder %s17, 0
      %p77 = por %p75, %p76
      %s78 = ssub.s32 %s18, %s30
      %s79 = ssub.s32 %s19, %s26
      %s80 = sor.u32 %s78, %s79
      %p81 = scmp.eq.s32.totalorder %s80, 0
      %s83 = sadd.s32 %s82, 1
      %s84 = scalar_select %p81, %s82, %s83
      %p87 = pneg %p81
      %p88 = scmp.eq.s32.totalorder %s11, 1
      %p89 = por %p87, %p88
      %p90 = scmp.ne.s32.totalorder %s82, %s85
      %p91 = scmp.eq.s32.totalorder %s11, 0
      %p92 = por %p90, %p91
      %p93 = scmp.ne.s32.totalorder %s82, %s85
      %p94 = scmp.eq.s32.totalorder %s16, 1
      %p95 = por %p93, %p94
      %p96 = scmp.ne.s32.totalorder %s85, %s86
      %p97 = scmp.eq.s32.totalorder %s16, 0
      %p98 = por %p96, %p97
      %p99 = scmp.ne.s32.totalorder %s85, %s86
      %p100 = scmp.eq.s32.totalorder %s17, 1
      %p101 = por %p99, %p100
      %p103 = scmp.ne.s32.totalorder %s86, %s102
      %p104 = scmp.eq.s32.totalorder %s17, 0
      %p105 = por %p103, %p104
      %p106 = scmp.le.s32.totalorder 1, %s11
      %p107 = scmp.lt.s32.totalorder %s11, 3
      %p108 = pnand %p106, %p107
      %p109 = pneg %p108
      // Predicated region
      $region9: #{tpu_custom_call.1} parent=5 // pred_check
        _
      $region10: #{tpu_custom_call.1} parent=5 // pred_check_branch
        %111 = sbr.rel (%p108) target = $region12
      $region11: #{tpu_custom_call.1} parent=5 // pred_region
        %s112 = ssub.s32 %s11, 1
        // Predicated region
        $region13: #{tpu_custom_call.1} parent=11 // pred_check
          %p113 = pneg %p70
        $region14: #{tpu_custom_call.1} parent=11 // pred_check_branch
          %115 = sbr.rel (%p113) target = $region16
        $region15: #{tpu_custom_call.1} parent=11 // pred_region
          _
        $region16: #{tpu_custom_call.1} parent=11 // pred_fallthru
          _
      $region12: #{tpu_custom_call.1} parent=5 // pred_fallthru
        _
      %p116 = scmp.lt.s32.totalorder %s11, 2
      // Predicated region
      $region17: #{tpu_custom_call.1} parent=5 // pred_check
        %p117 = pneg %p116
      $region18: #{tpu_custom_call.1} parent=5 // pred_check_branch
        %119 = sbr.rel (%p117) target = $region20
      $region19: #{tpu_custom_call.1} parent=5 // pred_region
        // Predicated region
        $region21: #{tpu_custom_call.1} parent=19 // pred_check
          %p120 = pneg %p43
        $region22: #{tpu_custom_call.1} parent=19 // pred_check_branch
          %122 = sbr.rel (%p120) target = $region24
        $region23: #{tpu_custom_call.1} parent=19 // pred_region
          %p123 = scmp.lt.s32.totalorder %s18, 1
          %s124 = scalar_select %p123, %s18, 1
          %s125 = smul.addr %s124, 8
          %s126 = scalar_lea.vmem %s0, %s125
        $region24: #{tpu_custom_call.1} parent=19 // pred_fallthru
          _
      $region20: #{tpu_custom_call.1} parent=5 // pred_fallthru
        _
      %p127 = scmp.le.s32.totalorder 1, %s11
      %p128 = scmp.lt.s32.totalorder %s11, 3
      %p129 = pnand %p127, %p128
      %p130 = pneg %p129
      // Predicated region
      $region25: #{tpu_custom_call.1} parent=5 // pred_check
        _
      $region26: #{tpu_custom_call.1} parent=5 // pred_check_branch
        %132 = sbr.rel (%p129) target = $region28
      $region27: #{tpu_custom_call.1} parent=5 // pred_region
        %s133 = ssub.s32 %s11, 1
        %p134 = scmp.lt.s32.totalorder %s20, 1
        %s135 = scalar_select %p134, %s20, 1
        %s136 = smul.addr %s135, 8
        %s137 = scalar_lea.vmem %s0, %s136
        %p138 = pneg %p49
        %p139 = pneg %p46
        %p140 = pneg %p70
        %p141 = pneg %p67
        %p142 = pneg %p98
        %p143 = pneg %p95
        %s144 = sand.u32 %s85, 1
        %s145 = scalar_lea.sflag [#allocation3], %s144
        %s146 = sand.u32 %s85, 1
        %s147 = smul.addr %s146, 8
        %s148 = scalar_lea.vmem [#allocation2], %s147
        %p149 = scmp.lt.s32.totalorder %s20, 1
        %s150 = scalar_select %p149, %s20, 1
        %s151 = smul.addr %s150, 8
        %s152 = scalar_lea.vmem %s0, %s151
        %s153 = smul.u32 %s21, 8
        %s154 = scalar_lea.vmem %s152, %s153
        %v155 = vld [vmem:[%s154] sm:$0xff]
        %p156 = scmp.gt.s32.totalorder %s153, 0
        %s157 = ssub.s32 %s153, 1
        %s158 = scalar_select %p156, %s157, 7
        %s159 = sadd.s32 %s153, 8
        %p160 = scmp.ge.s32.totalorder %s159, 8
        %s161 = scalar_select %p160, %s153, %s159
        %s162 = scalar_lea.vmem %s152, %s158
        %v163 = vld [vmem:[%s162] sm:$0x1]
        %s164 = scalar_lea.vmem %s152, %s161
        %v165 = vld [vmem:[%s164] sm:$0x1]
        %v167 = vrot.slane %v155, 7
        %vm169 = vcmask 1040384
        %v170 = vsel %vm169, %v163, %v167
        %v171 = vrot.slane %v155, 1
        %v174 = vrot.slane %v165, 1
        %vm176 = vcmask 1046528
        %v177 = vsel %vm176, %v171, %v174
        %v178 = vld [vmem:[%s1] sm:$0xf]
        %s179 = scalar_lea.vmem %s1, 4
        %v180 = vld [vmem:[%s179] sm:$0xf]
        %vm181 = vcmask 31744
        %v182 = vsel %vm181, %v155, 0
        %vm184 = vcmask 1043456
        %v186 = vsel %vm184, %v180, 0
        %188 = vmatpush.msra.mxu0 0.0
        %189 = vmatpush.msra.mxu0 0.0
        %190 = vmatpush.msra.mxu0 0.0
        %191 = vmatpush.msra.mxu0 0.0
        %192 = vmatpush.msra.mxu0 0.0
        %193 = vmatpush.msra.mxu0 0.0
        %194 = vmatpush.msra.mxu0 0.0
        %195 = vmatpush.msra.mxu0 0.0
        %196 = vmatpush.msra.mxu0 0.0
        %197 = vmatpush.msra.mxu0 0.0
        %198 = vmatpush.msra.mxu0 0.0
        %199 = vmatpush.msra.mxu0 0.0
        %200 = vmatpush.msra.mxu0 0.0
        %201 = vmatpush.msra.mxu0 0.0
        %202 = vmatpush.msra.mxu0 0.0
        %203 = vmatpush.msra.mxu0 %v186
        %204 = vmatmul.f32.gmra.mxu0 %v182
        %v205 = vpop.f32.mrf.mxu0
        %v206 = vadd.f32 0.0, %v205
        %207 = vdwg.mxu0
        %v209 = vsel %vm181, %v170, 0
        %v212 = vsel %vm184, %v178, 0
        %214 = vmatpush.msra.mxu0 0.0
        %215 = vmatpush.msra.mxu0 0.0
        %216 = vmatpush.msra.mxu0 0.0
        %217 = vmatpush.msra.mxu0 0.0
        %218 = vmatpush.msra.mxu0 0.0
        %219 = vmatpush.msra.mxu0 0.0
        %220 = vmatpush.msra.mxu0 0.0
        %221 = vmatpush.msra.mxu0 0.0
        %222 = vmatpush.msra.mxu0 0.0
        %223 = vmatpush.msra.mxu0 0.0
        %224 = vmatpush.msra.mxu0 0.0
        %225 = vmatpush.msra.mxu0 0.0
        %226 = vmatpush.msra.mxu0 0.0
        %227 = vmatpush.msra.mxu0 0.0
        %228 = vmatpush.msra.mxu0 0.0
        %229 = vmatpush.msra.mxu0 %v212
        %230 = vmatmul.f32.gmra.mxu0 %v209
        %v231 = vpop.f32.mrf.mxu0
        %v232 = vadd.f32 %v206, %v231
        %233 = vdwg.mxu0
        %s234 = scalar_lea.vmem %s1, 8
        %v235 = vld [vmem:[%s234] sm:$0xf]
        %v237 = vsel %vm181, %v177, 0
        %v240 = vsel %vm184, %v235, 0
        %242 = vmatpush.msra.mxu0 0.0
        %243 = vmatpush.msra.mxu0 0.0
        %244 = vmatpush.msra.mxu0 0.0
        %245 = vmatpush.msra.mxu0 0.0
        %246 = vmatpush.msra.mxu0 0.0
        %247 = vmatpush.msra.mxu0 0.0
        %248 = vmatpush.msra.mxu0 0.0
        %249 = vmatpush.msra.mxu0 0.0
        %250 = vmatpush.msra.mxu0 0.0
        %251 = vmatpush.msra.mxu0 0.0
        %252 = vmatpush.msra.mxu0 0.0
        %253 = vmatpush.msra.mxu0 0.0
        %254 = vmatpush.msra.mxu0 0.0
        %255 = vmatpush.msra.mxu0 0.0
        %256 = vmatpush.msra.mxu0 0.0
        %257 = vmatpush.msra.mxu0 %v240
        %258 = vmatmul.f32.gmra.mxu0 %v237
        %v259 = vpop.f32.mrf.mxu0
        %v260 = vadd.f32 0.0, %v259
        %261 = vdwg.mxu0
        %v262 = vadd.f32 %v232, %v260
        %vm263 = vcmask 261120
        %264 = vst.msk [vmem:[%s148] sm:$0xff] %vm263, %v262
        %s265 = sand.u32 %s85, 1
        %s266 = scalar_lea.sflag [#allocation3], %s265
        %s267 = sand.u32 %s85, 1
        %s268 = smul.addr %s267, 8
        %s269 = scalar_lea.vmem [#allocation2], %s268
        // Predicated region
        $region29: #{tpu_custom_call.1} parent=27 // pred_check
          %p270 = pneg %p95
        $region30: #{tpu_custom_call.1} parent=27 // pred_check_branch
          %272 = sbr.rel (%p270) target = $region32
        $region31: #{tpu_custom_call.1} parent=27 // pred_region
          %274 = vsyncadd %s266, 0
          %s275 = sadd.s32 %s21, %s20
          %s276 = smul.addr %s275, 8
          %s277 = scalar_lea.hbm %s2, %s276
          %s279 = sshll.u32 %s269, 4
          %s280 = int_to_ptr.vmem [resolvable:$true] %s279
          %s281 = sshll.u32 %s277, 4
          %s282 = int_to_ptr.hbm [resolvable:$true] %s281
          %284 = dma.vmem_to_hbm [thread:$0]  %s280, 128, %s282, %s266
        $region32: #{tpu_custom_call.1} parent=27 // pred_fallthru
          _
      $region28: #{tpu_custom_call.1} parent=5 // pred_fallthru
        _
      %p285 = scmp.le.s32.totalorder 2, %s11
      // Predicated region
      $region33: #{tpu_custom_call.1} parent=5 // pred_check
        %p286 = pneg %p285
      $region34: #{tpu_custom_call.1} parent=5 // pred_check_branch
        %288 = sbr.rel (%p286) target = $region36
      $region35: #{tpu_custom_call.1} parent=5 // pred_region
        %s289 = ssub.s32 %s11, 2
        // Predicated region
        $region37: #{tpu_custom_call.1} parent=35 // pred_check
          %p290 = pneg %p101
        $region38: #{tpu_custom_call.1} parent=35 // pred_check_branch
          %292 = sbr.rel (%p290) target = $region40
        $region39: #{tpu_custom_call.1} parent=35 // pred_region
          %s293 = sand.u32 %s86, 1
          %s294 = scalar_lea.sflag [#allocation3], %s293
          %s295 = sand.u32 %s86, 1
          %s296 = smul.addr %s295, 8
          %s297 = scalar_lea.vmem [#allocation2], %s296
          %299 = dma.done %s294, 128
        $region40: #{tpu_custom_call.1} parent=35 // pred_fallthru
          _
      $region36: #{tpu_custom_call.1} parent=5 // pred_fallthru
        _
    $region6: #{tpu_custom_call.1} parent=1 // loop_footer
      %s15 = sadd.s32 1, %s11
    $region7: #{tpu_custom_call.1} parent=1 // loop_footer_branch
      %10 = sbr.rel target = $region3
    $region8: #{tpu_custom_call.1} parent=1 // loop_exit
      _
    %300 = vsyncpa [#allocation3], 1
    %s301 = scalar_lea.sflag [#allocation3], 1
    %302 = vsyncpa %s301, 1

</llo_original>
